<compile_context>
chip_gen: v5e
topology: v5e:2x2
jax: 0.10.0
libtpu: 0.0.40
codegen_flags: <defaults>
</compile_context>

<pallas_src>
import math
from functools import partial

import jax
import jax.numpy as jnp
from jax.experimental import pallas as pl
from jax.experimental.pallas import tpu as pltpu


def _mlp2_transpose_kernel(x_ref, w1_ref, b1_ref, w2t_ref, b2_ref, o_ref, *, cdt):
    # x_ref:   (tB, tS, D_in)   source dtype (cast to `cdt` in-kernel)
    # w1_ref:  (D_in, D_in)     compute dtype       b1_ref: (1, D_in)  f32
    # w2t_ref: (D_out, D_in)    compute dtype (pre-transposed w2)
    # b2_ref:  (D_out, 1)       f32
    # o_ref:   (tB, D_out, tS)  output dtype -- lane dim is the sequence tile
    tB = x_ref.shape[0]
    w1 = w1_ref[...]
    w2t = w2t_ref[...]
    b1 = b1_ref[...]
    b2 = b2_ref[...]
    for b in range(tB):                         # tB is small (<= 8), static unroll
        x = x_ref[b].astype(cdt)                # (tS, D_in), cast in-kernel
        h = jnp.dot(x, w1, preferred_element_type=jnp.float32)
        h = jnp.maximum(h + b1, 0.0)            # Linear + ReLU (f32)
        # Second matmul emitted pre-transposed: contract last dims of
        # (D_out, D_in) x (tS, D_in) -> (D_out, tS).  Result pops from the MXU
        # already in the store layout; no XLU relayout of the big tile.
        yT = jax.lax.dot_general(
            w2t, h.astype(w2t.dtype),
            dimension_numbers=(((1,), (1,)), ((), ())),
            preferred_element_type=jnp.float32)
        o_ref[b] = jnp.maximum(yT + b2, 0.0).astype(o_ref.dtype)


def _vmem_limits():
    """Generation-aware (scoped VMEM limit, tile-chooser budget) in bytes."""
    try:
        phys = pltpu.get_tpu_info().vmem_capacity_bytes
    except Exception:
        phys = 64 << 20                     # conservative (v7x-sized) fallback
    limit = max(32 << 20, min(phys - (16 << 20), 96 << 20))
    budget = max(16 << 20, int(limit * 0.70))   # leave headroom under the limit
    return limit, budget


def _choose_tiles(B, S_work, D_in, D_out, in_isz, cmp_isz, out_isz, budget):
    """Largest (tB, tS) block that fits the VMEM budget.

    tS is a multiple of 128 (lane-dense output stores) or the full S_work when
    S_work < 128; tB is a divisor of B (capped at 8 to bound loop unrolling).
    """
    if S_work < 128:
        ts_cands = [S_work]
    else:
        ts_cands = [t for t in range(128, S_work + 1, 128) if S_work % t == 0]
    tb_cands = [t for t in range(1, min(B, 8) + 1) if B % t == 0]

    def cost(tb, ts):
        rows = tb * ts
        x_blocks = 2 * rows * D_in * in_isz            # double-buffered input tiles
        o_blocks = 2 * tb * D_out * ts * out_isz       # double-buffered output tiles
        live = rows * (2 * D_in + 2 * D_out) * 4       # x-cast/h/h-cast/yT staging
        weights = (2 * (D_in * D_in + D_in * D_out) * cmp_isz
                   + 2 * (D_in + D_out) * 4)           # resident (double-buffered) weights
        return x_blocks + o_blocks + live + weights

    pairs = sorted(((tb, ts) for tb in tb_cands for ts in ts_cands),
                   key=lambda p: (p[0] * p[1], p[1]), reverse=True)
    for tb, ts in pairs:
        if cost(tb, ts) <= budget:
            return tb, ts
    return 1, ts_cands[0]                              # smallest layout-legal block


def gumbel_decoder_forward(encoded, params, *, seq_tile=None, batch_tile=None,
                           compute_dtype=None, out_dtype=None):
    """encoded: (B, S, D_in) -> (B, D_out, S), matching GumbelDecoder.forward (n_layers=2)."""
    B, S, D_in = encoded.shape
    w1, b1, w2, b2 = params                 # w1: (D_in, D_in), w2: (D_in, D_out)
    D_out = w2.shape[1]
    out_dt = jnp.dtype(out_dtype) if out_dtype is not None else encoded.dtype
    cdt = jnp.dtype(compute_dtype) if compute_dtype is not None else encoded.dtype

    # Activations are NOT cast here (that would be an extra full HBM round
    # trip); only the tiny weights are prepared in the compute dtype, with w2
    # pre-transposed so the kernel can emit the second matmul already in the
    # (D_out, tS) store layout.
    w1c = w1.astype(cdt)
    w2t = jnp.transpose(w2).astype(cdt)                 # (D_out, D_in)
    b1f = b1.reshape(1, D_in).astype(jnp.float32)
    b2f = b2.reshape(D_out, 1).astype(jnp.float32)

    # Keep output stores lane-dense: pad S to a multiple of 128 when it has no
    # 128-aligned tiling; S < 128 uses a single full-S block (layout-legal).
    if S >= 128 and S % 128 != 0:
        S_work = ((S + 127) // 128) * 128
        x_in = jnp.pad(encoded, ((0, 0), (0, S_work - S), (0, 0)))
    else:
        S_work = S
        x_in = encoded

    vmem_limit, budget = _vmem_limits()
    in_isz = jnp.dtype(encoded.dtype).itemsize
    cmp_isz = jnp.dtype(cdt).itemsize
    out_isz = jnp.dtype(out_dt).itemsize
    tB_auto, tS_auto = _choose_tiles(B, S_work, D_in, D_out,
                                     in_isz, cmp_isz, out_isz, budget)
    tS = seq_tile if seq_tile is not None else tS_auto
    tB = batch_tile if batch_tile is not None else tB_auto

    if S_work % tS != 0:
        raise ValueError(f"seq tile {tS} must divide (padded) S={S_work}")
    if not (tS == S_work or tS % 128 == 0):
        raise ValueError(f"seq tile {tS} must be a multiple of 128 or equal S={S_work}")
    if B % tB != 0:
        raise ValueError(f"batch tile {tB} must divide B={B}")

    grid = (B // tB, S_work // tS)

    flops = 2 * B * S_work * D_in * (D_in + D_out)
    bytes_accessed = (B * S_work * D_in * in_isz           # activations in (source dtype)
                      + B * D_out * S_work * out_isz       # activations out
                      + (D_in * D_in + D_in * D_out) * cmp_isz
                      + (D_in + D_out) * 4)                 # weights + biases
    cost = pl.CostEstimate(flops=flops, transcendentals=0,
                           bytes_accessed=bytes_accessed)

    kernel = partial(_mlp2_transpose_kernel, cdt=cdt)

    out = pl.pallas_call(
        kernel,
        out_shape=jax.ShapeDtypeStruct((B, D_out, S_work), out_dt),
        grid_spec=pltpu.PrefetchScalarGridSpec(
            num_scalar_prefetch=0,
            grid=grid,
            in_specs=[
                # x block: (tB, tS, D_in), source dtype
                pl.BlockSpec((tB, tS, D_in), lambda bi, si: (bi, si, 0)),
                pl.BlockSpec((D_in, D_in), lambda bi, si: (0, 0)),   # w1 (resident)
                pl.BlockSpec((1, D_in), lambda bi, si: (0, 0)),      # b1
                pl.BlockSpec((D_out, D_in), lambda bi, si: (0, 0)),  # w2^T (resident)
                pl.BlockSpec((D_out, 1), lambda bi, si: (0, 0)),     # b2 (column)
            ],
            # fused transpose(1, 2): kernel writes (tB, D_out, tS), lane dim = tS
            out_specs=pl.BlockSpec((tB, D_out, tS), lambda bi, si: (bi, 0, si)),
        ),
        compiler_params=pltpu.CompilerParams(
            dimension_semantics=("parallel", "parallel"),   # v7x: shard across 2 TCs
            vmem_limit_bytes=vmem_limit,                    # generation-aware limit
        ),
        cost_estimate=cost,
    )(x_in, w1c, b1f, w2t, b2f)

    if S_work != S:
        out = out[:, :, :S]
    return out


def init_params(key, input_dim, out_dim):
    """PyTorch nn.Linear-style init (uniform +-1/sqrt(fan_in)); weights stored
    as (in, out) so the math is x @ W + b."""
    k1, k2, k3, k4 = jax.random.split(key, 4)
    bound = 1.0 / math.sqrt(input_dim)
    w1 = jax.random.uniform(k1, (input_dim, input_dim), jnp.float32, -bound, bound)
    b1 = jax.random.uniform(k2, (1, input_dim), jnp.float32, -bound, bound)
    w2 = jax.random.uniform(k3, (input_dim, out_dim), jnp.float32, -bound, bound)
    b2 = jax.random.uniform(k4, (1, out_dim), jnp.float32, -bound, bound)
    return w1, b1, w2, b2


def reference_forward(encoded, params):
    """Pure-JAX reference (matches the PyTorch module's math)."""
    w1, b1, w2, b2 = params
    h = jnp.maximum(encoded @ w1 + b1[0], 0.0)
    y = jnp.maximum(h @ w2 + b2[0], 0.0)
    return jnp.transpose(y, (0, 2, 1))


if __name__ == "__main__":
    # Small shapes consistent with the module: batch=2, seq=8, input_dim=32, out_dim=16
    B, S, input_dim, out_dim = 2, 8, 32, 16
    key = jax.random.PRNGKey(0)
    k_x, k_p = jax.random.split(key)
    encoded = jax.random.normal(k_x, (B, S, input_dim), dtype=jnp.float32)
    params = init_params(k_p, input_dim, out_dim)
    ref = reference_forward(encoded, params)

    # 1) f32 compute path (exact vs reference)
    out = jax.block_until_ready(gumbel_decoder_forward(encoded, params))
    assert out.shape == (B, out_dim, S), out.shape
    assert jnp.allclose(out, ref, atol=1e-5, rtol=1e-5), "f32 mismatch vs reference"

    # 2) bf16 MXU fast path: activations cast IN-KERNEL, f32 accumulation
    out_bf16 = jax.block_until_ready(
        gumbel_decoder_forward(encoded, params, compute_dtype=jnp.bfloat16))
    assert out_bf16.shape == (B, out_dim, S), out_bf16.shape
    assert jnp.allclose(out_bf16, ref, atol=5e-2, rtol=5e-2), "bf16 mismatch vs reference"

    # 3) Multi-step grid with lane-dense 128-wide output blocks + batch folding
    B2, S2, D2_in, D2_out = 2, 256, 64, 32
    k_x2, k_p2 = jax.random.split(jax.random.PRNGKey(1))
    enc2 = jax.random.normal(k_x2, (B2, S2, D2_in), dtype=jnp.float32)
    params2 = init_params(k_p2, D2_in, D2_out)
    out2 = jax.block_until_ready(gumbel_decoder_forward(enc2, params2, seq_tile=128))
    ref2 = reference_forward(enc2, params2)
    assert out2.shape == (B2, D2_out, S2), out2.shape
    assert jnp.allclose(out2, ref2, atol=1e-3, rtol=1e-3), "tiled mismatch vs reference"

    # 4) Awkward S (no 128-multiple divisor): padded internally, sliced back
    B3, S3, D3_in, D3_out = 2, 200, 32, 16
    k_x3, k_p3 = jax.random.split(jax.random.PRNGKey(2))
    enc3 = jax.random.normal(k_x3, (B3, S3, D3_in), dtype=jnp.float32)
    params3 = init_params(k_p3, D3_in, D3_out)
    out3 = jax.block_until_ready(gumbel_decoder_forward(enc3, params3))
    ref3 = reference_forward(enc3, params3)
    assert out3.shape == (B3, D3_out, S3), out3.shape
    assert jnp.allclose(out3, ref3, atol=1e-4, rtol=1e-4), "padded-S mismatch vs reference"

    print("KERNEL_OK")
</pallas_src>

<mosaic_0001>
module attributes {stable_mosaic.version = 11 : i64} {
  func.func @_mlp2_transpose_kernel(%arg0: i32, %arg1: i32, %arg2: memref<2x8x32xf32, #tpu.memory_space<vmem>>, %arg3: memref<32x32xf32, #tpu.memory_space<vmem>>, %arg4: memref<1x32xf32, #tpu.memory_space<vmem>>, %arg5: memref<16x32xf32, #tpu.memory_space<vmem>>, %arg6: memref<16x1xf32, #tpu.memory_space<vmem>>, %arg7: memref<2x16x8xf32, #tpu.memory_space<vmem>>) attributes {dimension_semantics = [#tpu.dimension_semantics<parallel>, #tpu.dimension_semantics<parallel>], iteration_bounds = array<i64: 1, 1>, scalar_prefetch = 0 : i64, scratch_operands = 0 : i64, tpu.core_type = #tpu.core_type<tc>, window_params = [{transform_indices = @transform_0, window_bounds = array<i64: 2, 8, 32>}, {pipeline_mode = #tpu.pipeline_mode<synchronous>, transform_indices = @transform_1, window_bounds = array<i64: 32, 32>}, {pipeline_mode = #tpu.pipeline_mode<synchronous>, transform_indices = @transform_2, window_bounds = array<i64: 1, 32>}, {pipeline_mode = #tpu.pipeline_mode<synchronous>, transform_indices = @transform_3, window_bounds = array<i64: 16, 32>}, {pipeline_mode = #tpu.pipeline_mode<synchronous>, transform_indices = @transform_4, window_bounds = array<i64: 16, 1>}, {transform_indices = @transform_5, window_bounds = array<i64: 2, 16, 8>}]} {
    %c0 = arith.constant 0 : index
    %c0_0 = arith.constant 0 : index
    %0 = vector.load %arg3[%c0, %c0_0] : memref<32x32xf32, #tpu.memory_space<vmem>>, vector<32x32xf32>
    %c0_1 = arith.constant 0 : index
    %c0_2 = arith.constant 0 : index
    %1 = vector.load %arg5[%c0_1, %c0_2] : memref<16x32xf32, #tpu.memory_space<vmem>>, vector<16x32xf32>
    %c0_3 = arith.constant 0 : index
    %c0_4 = arith.constant 0 : index
    %2 = vector.load %arg4[%c0_3, %c0_4] : memref<1x32xf32, #tpu.memory_space<vmem>>, vector<1x32xf32>
    %c0_5 = arith.constant 0 : index
    %c0_6 = arith.constant 0 : index
    %3 = vector.load %arg6[%c0_5, %c0_6] : memref<16x1xf32, #tpu.memory_space<vmem>>, vector<16x1xf32>
    %c0_7 = arith.constant 0 : index
    %c0_8 = arith.constant 0 : index
    %c0_9 = arith.constant 0 : index
    %4 = vector.load %arg2[%c0_7, %c0_8, %c0_9] : memref<2x8x32xf32, #tpu.memory_space<vmem>>, vector<1x8x32xf32>
    %5 = vector.shape_cast %4 : vector<1x8x32xf32> to vector<8x32xf32>
    %cst = arith.constant dense<0.000000e+00> : vector<8x32xf32>
    %6 = tpu.matmul %5, %0, %cst {dimension_numbers = #tpu.dot_dimension_numbers<[1], [0], [0], [1], [0, 0, 1, 1], [], []>} : vector<8x32xf32>, vector<32x32xf32>, vector<8x32xf32> -> vector<8x32xf32>
    %7 = vector.broadcast %2 : vector<1x32xf32> to vector<8x32xf32>
    %8 = arith.addf %6, %7 : vector<8x32xf32>
    %cst_10 = arith.constant 0.000000e+00 : f32
    %9 = vector.broadcast %cst_10 : f32 to vector<8x32xf32>
    %10 = arith.maximumf %8, %9 : vector<8x32xf32>
    %cst_11 = arith.constant dense<0.000000e+00> : vector<16x8xf32>
    %11 = tpu.matmul %1, %10, %cst_11 {dimension_numbers = #tpu.dot_dimension_numbers<[1], [1], [0], [0], [0, 0, 1, 0], [], []>} : vector<16x32xf32>, vector<8x32xf32>, vector<16x8xf32> -> vector<16x8xf32>
    %12 = vector.broadcast %3 : vector<16x1xf32> to vector<16x8xf32>
    %13 = arith.addf %11, %12 : vector<16x8xf32>
    %cst_12 = arith.constant 0.000000e+00 : f32
    %14 = vector.broadcast %cst_12 : f32 to vector<16x8xf32>
    %15 = arith.maximumf %13, %14 : vector<16x8xf32>
    %c0_13 = arith.constant 0 : index
    %c0_14 = arith.constant 0 : index
    %c0_15 = arith.constant 0 : index
    %16 = vector.load %arg7[%c0_13, %c0_14, %c0_15] : memref<2x16x8xf32, #tpu.memory_space<vmem>>, vector<1x16x8xf32>
    %17 = vector.shape_cast %16 : vector<1x16x8xf32> to vector<16x8xf32>
    %18 = vector.shape_cast %15 : vector<16x8xf32> to vector<1x16x8xf32>
    tpu.vector_store %arg7[%c0_13, %c0_14, %c0_15], %18 {strides = array<i32>} : memref<2x16x8xf32, #tpu.memory_space<vmem>>, vector<1x16x8xf32>,
    %c1 = arith.constant 1 : index
    %c0_16 = arith.constant 0 : index
    %c0_17 = arith.constant 0 : index
    %19 = vector.load %arg2[%c1, %c0_16, %c0_17] : memref<2x8x32xf32, #tpu.memory_space<vmem>>, vector<1x8x32xf32>
    %20 = vector.shape_cast %19 : vector<1x8x32xf32> to vector<8x32xf32>
    %cst_18 = arith.constant dense<0.000000e+00> : vector<8x32xf32>
    %21 = tpu.matmul %20, %0, %cst_18 {dimension_numbers = #tpu.dot_dimension_numbers<[1], [0], [0], [1], [0, 0, 1, 1], [], []>} : vector<8x32xf32>, vector<32x32xf32>, vector<8x32xf32> -> vector<8x32xf32>
    %22 = vector.broadcast %2 : vector<1x32xf32> to vector<8x32xf32>
    %23 = arith.addf %21, %22 : vector<8x32xf32>
    %cst_19 = arith.constant 0.000000e+00 : f32
    %24 = vector.broadcast %cst_19 : f32 to vector<8x32xf32>
    %25 = arith.maximumf %23, %24 : vector<8x32xf32>
    %cst_20 = arith.constant dense<0.000000e+00> : vector<16x8xf32>
    %26 = tpu.matmul %1, %25, %cst_20 {dimension_numbers = #tpu.dot_dimension_numbers<[1], [1], [0], [0], [0, 0, 1, 0], [], []>} : vector<16x32xf32>, vector<8x32xf32>, vector<16x8xf32> -> vector<16x8xf32>
    %27 = vector.broadcast %3 : vector<16x1xf32> to vector<16x8xf32>
    %28 = arith.addf %26, %27 : vector<16x8xf32>
    %cst_21 = arith.constant 0.000000e+00 : f32
    %29 = vector.broadcast %cst_21 : f32 to vector<16x8xf32>
    %30 = arith.maximumf %28, %29 : vector<16x8xf32>
    %c1_22 = arith.constant 1 : index
    %c0_23 = arith.constant 0 : index
    %c0_24 = arith.constant 0 : index
    %31 = vector.load %arg7[%c1_22, %c0_23, %c0_24] : memref<2x16x8xf32, #tpu.memory_space<vmem>>, vector<1x16x8xf32>
    %32 = vector.shape_cast %31 : vector<1x16x8xf32> to vector<16x8xf32>
    %33 = vector.shape_cast %30 : vector<16x8xf32> to vector<1x16x8xf32>
    tpu.vector_store %arg7[%c1_22, %c0_23, %c0_24], %33 {strides = array<i32>} : memref<2x16x8xf32, #tpu.memory_space<vmem>>, vector<1x16x8xf32>,
    return
  }
  func.func @transform_0(%arg0: i32, %arg1: i32) -> (i32, i32, i32) {
    %c0_i32 = arith.constant 0 : i32
    %c0_i32_0 = arith.constant 0 : i32
    return %arg0, %arg1, %c0_i32 : i32, i32, i32
  }
  func.func @transform_1(%arg0: i32, %arg1: i32) -> (i32, i32) {
    %c0_i32 = arith.constant 0 : i32
    %c0_i32_0 = arith.constant 0 : i32
    %c0_i32_1 = arith.constant 0 : i32
    return %c0_i32, %c0_i32_0 : i32, i32
  }
  func.func @transform_2(%arg0: i32, %arg1: i32) -> (i32, i32) {
    %c0_i32 = arith.constant 0 : i32
    %c0_i32_0 = arith.constant 0 : i32
    %c0_i32_1 = arith.constant 0 : i32
    return %c0_i32, %c0_i32_0 : i32, i32
  }
  func.func @transform_3(%arg0: i32, %arg1: i32) -> (i32, i32) {
    %c0_i32 = arith.constant 0 : i32
    %c0_i32_0 = arith.constant 0 : i32
    %c0_i32_1 = arith.constant 0 : i32
    return %c0_i32, %c0_i32_0 : i32, i32
  }
  func.func @transform_4(%arg0: i32, %arg1: i32) -> (i32, i32) {
    %c0_i32 = arith.constant 0 : i32
    %c0_i32_0 = arith.constant 0 : i32
    %c0_i32_1 = arith.constant 0 : i32
    return %c0_i32, %c0_i32_0 : i32, i32
  }
  func.func @transform_5(%arg0: i32, %arg1: i32) -> (i32, i32, i32) {
    %c0_i32 = arith.constant 0 : i32
    %c0_i32_0 = arith.constant 0 : i32
    return %arg0, %c0_i32, %arg1 : i32, i32, i32
  }
}

</mosaic_0001>

<llo_original>
// kernel: tpu_custom_call.1
$region0: #{tpu_custom_call.1}
  #allocation0 [shape = 'u32[]', space=smem, size = 0x4, offset = 0x4, fixed_abs, tag = 'smem constant byte address 0x4 - core index']
  #allocation1 [shape = 'u32[72,128]{1,0:T(1,128)}', space=vmem, size = 0x9000, scoped, tag = 'internal scratch']
  %s0 = inlined_call_operand.vmem [shape: f32[2,8,32], index: 0, kind: input, shape index: {}]
  %s1 = inlined_call_operand.hbm [shape: f32[32,32], index: 1, kind: input, shape index: {}]
  %s2 = inlined_call_operand.vmem [shape: f32[1,32], index: 2, kind: input, shape index: {}]
  %s3 = inlined_call_operand.hbm [shape: f32[16,32], index: 3, kind: input, shape index: {}]
  %s4 = inlined_call_operand.vmem [shape: f32[16,1], index: 4, kind: input, shape index: {}]
  %s5 = inlined_call_operand.vmem [shape: f32[2,16,8], index: 5, kind: output, shape index: {}]
  %s6 = sld [smem:[#allocation0]]
  $region38: #{tpu_custom_call.1} parent=0
    _
  %s8 = ssub.s32 1, %s6
  %s9 = scalar_select 0, %s8, %s6
  $region1: #{tpu_custom_call.1} parent=0
    #allocation2 [shape = 'u8[16384]{0}', space=vmem, size = 0x4000, scoped, tag = 'input window, operand 1, single buffered']
    #allocation3 [shape = 's32[1]{0}', space=sflag, size = 0x4, scoped, tag = 'scoped memory for tpu_custom_call.1']
    #allocation4 [shape = 'u8[8192]{0}', space=vmem, size = 0x2000, scoped, tag = 'input window, operand 3, single buffered']
    #allocation5 [shape = 's32[1]{0}', space=sflag, size = 0x4, scoped, tag = 'scoped memory for tpu_custom_call.1']
    %10 = vsyncpa [#allocation3], 0
    %11 = vsyncpa [#allocation5], 0
    // Predicated region
    $region2: #{tpu_custom_call.1} parent=1 // pred_check
      _
    $region3: #{tpu_custom_call.1} parent=1 // pred_check_branch
      %13 = sbr.rel (0) target = $region5
    $region4: #{tpu_custom_call.1} parent=1 // pred_region
      _
    $region5: #{tpu_custom_call.1} parent=1 // pred_fallthru
      _
    // Predicated region
    $region6: #{tpu_custom_call.1} parent=1 // pred_check
      _
    $region7: #{tpu_custom_call.1} parent=1 // pred_check_branch
      %15 = sbr.rel (0) target = $region9
    $region8: #{tpu_custom_call.1} parent=1 // pred_region
      %17 = vsyncadd [#allocation3], 0
      %s18 = sshll.u32 %s1, 4
      %s19 = int_to_ptr.hbm [resolvable:$true] %s18
      %s20 = sshll.u32 [#allocation2], 4
      %s21 = int_to_ptr.vmem [resolvable:$true] %s20
      %26 = dma.hbm_to_vmem [thread:$0]  %s19, 512, %s21, [#allocation3], 128, 128, 8
    $region9: #{tpu_custom_call.1} parent=1 // pred_fallthru
      _
    // Predicated region
    $region10: #{tpu_custom_call.1} parent=1 // pred_check
      _
    $region11: #{tpu_custom_call.1} parent=1 // pred_check_branch
      %28 = sbr.rel (0) target = $region13
    $region12: #{tpu_custom_call.1} parent=1 // pred_region
      _
    $region13: #{tpu_custom_call.1} parent=1 // pred_fallthru
      _
    // Predicated region
    $region14: #{tpu_custom_call.1} parent=1 // pred_check
      _
    $region15: #{tpu_custom_call.1} parent=1 // pred_check_branch
      %30 = sbr.rel (0) target = $region17
    $region16: #{tpu_custom_call.1} parent=1 // pred_region
      %32 = vsyncadd [#allocation5], 0
      %s33 = sshll.u32 %s3, 4
      %s34 = int_to_ptr.hbm [resolvable:$true] %s33
      %s35 = sshll.u32 [#allocation4], 4
      %s36 = int_to_ptr.vmem [resolvable:$true] %s35
      %41 = dma.hbm_to_vmem [thread:$0]  %s34, 256, %s36, [#allocation5], 128, 128, 8
    $region17: #{tpu_custom_call.1} parent=1 // pred_fallthru
      _
    // Predicated region
    $region18: #{tpu_custom_call.1} parent=1 // pred_check
      _
    $region19: #{tpu_custom_call.1} parent=1 // pred_check_branch
      %43 = sbr.rel (0) target = $region21
    $region20: #{tpu_custom_call.1} parent=1 // pred_region
      _
    $region21: #{tpu_custom_call.1} parent=1 // pred_fallthru
      _
    // Predicated region
    $region22: #{tpu_custom_call.1} parent=1 // pred_check
      _
    $region23: #{tpu_custom_call.1} parent=1 // pred_check_branch
      %45 = sbr.rel (0) target = $region25
    $region24: #{tpu_custom_call.1} parent=1 // pred_region
      %47 = dma.done [#allocation3], 512
    $region25: #{tpu_custom_call.1} parent=1 // pred_fallthru
      _
    // Predicated region
    $region26: #{tpu_custom_call.1} parent=1 // pred_check
      _
    $region27: #{tpu_custom_call.1} parent=1 // pred_check_branch
      %49 = sbr.rel (0) target = $region29
    $region28: #{tpu_custom_call.1} parent=1 // pred_region
      %51 = dma.done [#allocation5], 256
    $region29: #{tpu_custom_call.1} parent=1 // pred_fallthru
      _
    %v52 = vld [vmem:[#allocation2] sm:$0xff]
    %v53 = vld [vmem:[#allocation2 + $0x8] sm:$0xff]
    %v54 = vld [vmem:[#allocation2 + $0x10] sm:$0xff]
    %v55 = vld [vmem:[#allocation2 + $0x18] sm:$0xff]
    %v56 = vld [vmem:[#allocation4] sm:$0xff]
    %v57 = vld [vmem:[#allocation4 + $0x8] sm:$0xff]
    %v58 = vld [vmem:[%s2] sm:$0x1]
    %v59 = vld [vmem:[%s4] sm:$0xff]
    %v60 = vld [vmem:[%s4 + $0x8] sm:$0xff]
    %v61 = vld [vmem:[%s0] sm:$0xff]
    %v63 = vperm.slane %v58, 0
    %vm65 = vcmask 261120
    %v67 = vsel %vm65, %v61, 0
    %69 = vmatpush.msra.mxu0 0.0
    %70 = vmatpush.msra.mxu0 0.0
    %71 = vmatpush.msra.mxu0 0.0
    %72 = vmatpush.msra.mxu0 0.0
    %73 = vmatpush.msra.mxu0 0.0
    %74 = vmatpush.msra.mxu0 0.0
    %75 = vmatpush.msra.mxu0 0.0
    %76 = vmatpush.msra.mxu0 0.0
    %77 = vmatpush.msra.mxu0 0.0
    %78 = vmatpush.msra.mxu0 0.0
    %79 = vmatpush.msra.mxu0 0.0
    %80 = vmatpush.msra.mxu0 0.0
    %81 = vmatpush.msra.mxu0 %v55
    %82 = vmatpush.msra.mxu0 %v54
    %83 = vmatpush.msra.mxu0 %v53
    %84 = vmatpush.msra.mxu0 %v52
    %85 = vmatmul.f32.gmra.mxu0 %v67
    %v86 = vpop.f32.mrf.mxu0
    %v87 = vadd.f32 %v63, %v86
    %88 = vdwg.mxu0
    %v89 = vmax.f32 %v87, 0.0
    %91 = vset.pattern.permute.xlu0 0
    %92 = vperm.xlu0 %91, %v59
    %v93 = vpop.permute.xlu0 %92
    %96 = vset.pattern.permute.xlu0 0
    %97 = vperm.xlu0 %96, %v60
    %v98 = vpop.permute.xlu0 %97
    %v101 = vsel %vm65, %v56, 0
    %v104 = vsel %vm65, %v57, 0
    %v107 = vsel %vm65, %v89, 0
    %109 = vmatpush.xpose.msra.mxu0 0.0
    %110 = vmatpush.xpose.msra.mxu0 0.0
    %111 = vmatpush.xpose.msra.mxu0 0.0
    %112 = vmatpush.xpose.msra.mxu0 0.0
    %113 = vmatpush.xpose.msra.mxu0 0.0
    %114 = vmatpush.xpose.msra.mxu0 0.0
    %115 = vmatpush.xpose.msra.mxu0 0.0
    %116 = vmatpush.xpose.msra.mxu0 0.0
    %117 = vmatpush.xpose.msra.mxu0 0.0
    %118 = vmatpush.xpose.msra.mxu0 0.0
    %119 = vmatpush.xpose.msra.mxu0 0.0
    %120 = vmatpush.xpose.msra.mxu0 0.0
    %121 = vmatpush.xpose.msra.mxu0 0.0
    %122 = vmatpush.xpose.msra.mxu0 0.0
    %123 = vmatpush.xpose.msra.mxu0 0.0
    %124 = vmatpush.xpose.msra.mxu0 %v107
    %125 = vmatmul.f32.gmra.mxu0 %v101
    %v126 = vpop.f32.mrf.mxu0
    %v127 = vadd.f32 %v93, %v126
    %128 = vmatmul.f32.gmra.mxu0 %v104
    %v129 = vpop.f32.mrf.mxu0
    %v130 = vadd.f32 %v98, %v129
    %131 = vdwg.mxu0
    %v132 = vmax.f32 %v127, 0.0
    %v133 = vmax.f32 %v130, 0.0
    %vm134 = vcmask 64512
    %135 = vst.msk [vmem:[%s5] sm:$0xff] %vm134, %v132
    %136 = vst.msk [vmem:[%s5 + $0x8] sm:$0xff] %vm134, %v133
    %s137 = scalar_lea.vmem %s0, 8
    %v138 = vld [vmem:[%s137] sm:$0xff]
    %v140 = vsel %vm65, %v138, 0
    %142 = vmatpush.msra.mxu0 0.0
    %143 = vmatpush.msra.mxu0 0.0
    %144 = vmatpush.msra.mxu0 0.0
    %145 = vmatpush.msra.mxu0 0.0
    %146 = vmatpush.msra.mxu0 0.0
    %147 = vmatpush.msra.mxu0 0.0
    %148 = vmatpush.msra.mxu0 0.0
    %149 = vmatpush.msra.mxu0 0.0
    %150 = vmatpush.msra.mxu0 0.0
    %151 = vmatpush.msra.mxu0 0.0
    %152 = vmatpush.msra.mxu0 0.0
    %153 = vmatpush.msra.mxu0 0.0
    %154 = vmatpush.msra.mxu0 %v55
    %155 = vmatpush.msra.mxu0 %v54
    %156 = vmatpush.msra.mxu0 %v53
    %157 = vmatpush.msra.mxu0 %v52
    %158 = vmatmul.f32.gmra.mxu0 %v140
    %v159 = vpop.f32.mrf.mxu0
    %v160 = vadd.f32 %v63, %v159
    %161 = vdwg.mxu0
    %v162 = vmax.f32 %v160, 0.0
    %v164 = vsel %vm65, %v162, 0
    %166 = vmatpush.xpose.msra.mxu0 0.0
    %167 = vmatpush.xpose.msra.mxu0 0.0
    %168 = vmatpush.xpose.msra.mxu0 0.0
    %169 = vmatpush.xpose.msra.mxu0 0.0
    %170 = vmatpush.xpose.msra.mxu0 0.0
    %171 = vmatpush.xpose.msra.mxu0 0.0
    %172 = vmatpush.xpose.msra.mxu0 0.0
    %173 = vmatpush.xpose.msra.mxu0 0.0
    %174 = vmatpush.xpose.msra.mxu0 0.0
    %175 = vmatpush.xpose.msra.mxu0 0.0
    %176 = vmatpush.xpose.msra.mxu0 0.0
    %177 = vmatpush.xpose.msra.mxu0 0.0
    %178 = vmatpush.xpose.msra.mxu0 0.0
    %179 = vmatpush.xpose.msra.mxu0 0.0
    %180 = vmatpush.xpose.msra.mxu0 0.0
    %181 = vmatpush.xpose.msra.mxu0 %v164
    %182 = vmatmul.f32.gmra.mxu0 %v101
    %v183 = vpop.f32.mrf.mxu0
    %v184 = vadd.f32 %v93, %v183
    %185 = vmatmul.f32.gmra.mxu0 %v104
    %v186 = vpop.f32.mrf.mxu0
    %v187 = vadd.f32 %v98, %v186
    %188 = vdwg.mxu0
    %v189 = vmax.f32 %v184, 0.0
    %v190 = vmax.f32 %v187, 0.0
    %s191 = scalar_lea.vmem %s5, 16
    %192 = vst.msk [vmem:[%s191] sm:$0xff] %vm134, %v189
    %193 = vst.msk [vmem:[%s191 + $0x8] sm:$0xff] %vm134, %v190
    // Predicated region
    $region30: #{tpu_custom_call.1} parent=1 // pred_check
      _
    $region31: #{tpu_custom_call.1} parent=1 // pred_check_branch
      %195 = sbr.rel (0) target = $region33
    $region32: #{tpu_custom_call.1} parent=1 // pred_region
      _
    $region33: #{tpu_custom_call.1} parent=1 // pred_fallthru
      _
    // Predicated region
    $region34: #{tpu_custom_call.1} parent=1 // pred_check
      _
    $region35: #{tpu_custom_call.1} parent=1 // pred_check_branch
      %197 = sbr.rel (0) target = $region37
    $region36: #{tpu_custom_call.1} parent=1 // pred_region
      _
    $region37: #{tpu_custom_call.1} parent=1 // pred_fallthru
      _
    %198 = vsyncpa [#allocation3], 1
    %199 = vsyncpa [#allocation5], 1

</llo_original>
